<compile_context>
chip_gen: v5e
topology: v5e:2x2
jax: 0.10.0
libtpu: 0.0.40
codegen_flags: <defaults>
</compile_context>

<pallas_src>
from functools import partial

import jax
import jax.numpy as jnp
from jax.experimental import pallas as pl
from jax.experimental.pallas import tpu as pltpu

HIDDEN = 21     # matches nn.Linear(n_observations, 21) / nn.Linear(21, 21)
LANE = 128      # lane-dense padding for hidden / action dims
HID_P = 128     # padded hidden size (zero-padded columns stay zero through ReLU)


def _round_up(n, m):
    return (n + m - 1) // m * m


def _dqn_kernel(x_ref, p_ref, o_ref, *, obs_p, hid_p):
    # Static, 8-aligned row offsets into the packed parameter slab.
    r_w1 = 0
    r_w2 = obs_p
    r_w3 = obs_p + hid_p
    r_b = obs_p + 2 * hid_p

    x = x_ref[...]                                   # (TB, obs_p) f32, cols >= n_obs are zero

    w1 = p_ref[r_w1:r_w1 + obs_p, :]                 # (obs_p, 128), rows >= n_obs zero
    w2 = p_ref[r_w2:r_w2 + hid_p, :]                 # (128, 128),   rows >= 21 zero
    w3 = p_ref[r_w3:r_w3 + hid_p, :]                 # (128, 128),   rows >= 21 zero
    bias = p_ref[r_b:r_b + 8, :]                     # one (8,128) tile: b1,b2,b3 in rows 0..2
    b1 = bias[0:1, :]
    b2 = bias[1:2, :]
    b3 = bias[2:3, :]

    h = jnp.maximum(jnp.dot(x, w1, preferred_element_type=jnp.float32) + b1, 0.0)
    h = jnp.maximum(jnp.dot(h, w2, preferred_element_type=jnp.float32) + b2, 0.0)
    o_ref[...] = jnp.dot(h, w3, preferred_element_type=jnp.float32) + b3


def pack_params(params, n_observations, n_actions):
    """Pack (and zero-pad) all six parameter tensors into one f32 slab.

    Slab layout (rows x 128 lanes); every section offset is a multiple of 8:
      [0              : obs_p            ]  w1  (rows 0:n_obs, cols 0:21 valid)
      [obs_p          : obs_p + 128      ]  w2  (rows/cols 0:21 valid)
      [obs_p + 128    : obs_p + 2*128    ]  w3  (rows 0:21, cols 0:n_actions valid)
      [obs_p + 2*128  : obs_p + 2*128 + 8]  b1, b2, b3 as rows 0, 1, 2 (rest zero)
    """
    assert HIDDEN <= LANE and n_actions <= LANE
    obs_p = _round_up(max(n_observations, 1), 8)
    r_b = obs_p + 2 * HID_P
    slab = jnp.zeros((r_b + 8, LANE), jnp.float32)
    slab = slab.at[0:n_observations, 0:HIDDEN].set(params["w1"])
    slab = slab.at[obs_p:obs_p + HIDDEN, 0:HIDDEN].set(params["w2"])
    slab = slab.at[obs_p + HID_P:obs_p + HID_P + HIDDEN, 0:n_actions].set(params["w3"])
    slab = slab.at[r_b + 0, 0:HIDDEN].set(params["b1"].reshape(-1))
    slab = slab.at[r_b + 1, 0:HIDDEN].set(params["b2"].reshape(-1))
    slab = slab.at[r_b + 2, 0:n_actions].set(params["b3"].reshape(-1))
    return slab


def dqn_forward(x, packed, *, n_observations, n_actions, block_batch=1024):
    """DQN forward pass: one pallas_call, batch-tiled, params DMA'd once.

    x:      (batch, n_observations) float32
    packed: output of pack_params()
    returns (batch, n_actions) float32 Q-values
    """
    batch = x.shape[0]
    obs_p = _round_up(max(n_observations, 1), 8)

    # Batch tiling: single full-batch tile for small batches, 8-aligned tiles
    # (double-buffered, megacore-parallel on v7x) for large replay batches.
    tb = batch if batch <= block_batch else block_batch
    padded_batch = _round_up(batch, tb)

    # Zero-pad: batch up to the tile grid, observations up to obs_p so that the
    # w1 slab slice is tile-aligned. The padded w1 rows are zero -> no effect.
    pad_b = padded_batch - batch
    pad_o = obs_p - n_observations
    if pad_b or pad_o:
        x = jnp.pad(x, ((0, pad_b), (0, pad_o)))
    num_tiles = pl.cdiv(padded_batch, tb)

    out = pl.pallas_call(
        partial(_dqn_kernel, obs_p=obs_p, hid_p=HID_P),
        out_shape=jax.ShapeDtypeStruct((padded_batch, LANE), jnp.float32),
        grid=(num_tiles,),
        in_specs=[
            pl.BlockSpec((tb, obs_p), lambda i: (i, 0)),    # x tile
            pl.BlockSpec(packed.shape, lambda i: (0, 0)),   # params: grid-invariant, VMEM-resident
        ],
        out_specs=pl.BlockSpec((tb, LANE), lambda i: (i, 0)),  # lane-dense output
        compiler_params=pltpu.CompilerParams(
            dimension_semantics=("parallel",)),                 # 2x on v7x megacore
    )(x, packed)

    return out[:batch, :n_actions]


def init_params(key, n_observations, n_actions):
    """Deterministic init mimicking PyTorch's default Linear init (U(-1/sqrt(fan_in), +))."""
    ks = jax.random.split(key, 6)

    def linear(kw, kb, fan_in, fan_out):
        bound = 1.0 / jnp.sqrt(jnp.float32(fan_in))
        w = jax.random.uniform(kw, (fan_in, fan_out), jnp.float32, -bound, bound)
        b = jax.random.uniform(kb, (1, fan_out), jnp.float32, -bound, bound)
        return w, b

    w1, b1 = linear(ks[0], ks[1], n_observations, HIDDEN)
    w2, b2 = linear(ks[2], ks[3], HIDDEN, HIDDEN)
    w3, b3 = linear(ks[4], ks[5], HIDDEN, n_actions)
    return {"w1": w1, "b1": b1, "w2": w2, "b2": b2, "w3": w3, "b3": b3}


def dqn_reference(x, p):
    h1 = jnp.maximum(x @ p["w1"] + p["b1"], 0.0)
    h2 = jnp.maximum(h1 @ p["w2"] + p["b2"], 0.0)
    return h2 @ p["w3"] + p["b3"]


if __name__ == "__main__":
    n_observations = 4   # e.g. CartPole observation size
    n_actions = 2
    batch = 2

    key = jax.random.PRNGKey(0)
    k_x, k_p = jax.random.split(key)
    x = jax.random.normal(k_x, (batch, n_observations), jnp.float32)
    params = init_params(k_p, n_observations, n_actions)

    packed = pack_params(params, n_observations, n_actions)  # one-time packing
    out = dqn_forward(x, packed, n_observations=n_observations, n_actions=n_actions)
    out = jax.block_until_ready(out)

    ref = dqn_reference(x, params)
    assert out.shape == (batch, n_actions)
    assert jnp.allclose(out, ref, atol=1e-4, rtol=1e-4), "mismatch vs reference"

    print("KERNEL_OK")
</pallas_src>

<mosaic_0001>
module attributes {stable_mosaic.version = 11 : i64} {
  func.func @_dqn_kernel(%arg0: i32, %arg1: memref<2x8xf32, #tpu.memory_space<vmem>>, %arg2: memref<272x128xf32, #tpu.memory_space<vmem>>, %arg3: memref<2x128xf32, #tpu.memory_space<vmem>>) attributes {dimension_semantics = [#tpu.dimension_semantics<parallel>], iteration_bounds = array<i64: 1>, scalar_prefetch = 0 : i64, scratch_operands = 0 : i64, tpu.core_type = #tpu.core_type<tc>, window_params = [{transform_indices = @transform_0, window_bounds = array<i64: 2, 8>}, {pipeline_mode = #tpu.pipeline_mode<synchronous>, transform_indices = @transform_1, window_bounds = array<i64: 272, 128>}, {transform_indices = @transform_2, window_bounds = array<i64: 2, 128>}]} {
    %c0 = arith.constant 0 : index
    %c0_0 = arith.constant 0 : index
    %0 = vector.load %arg1[%c0, %c0_0] : memref<2x8xf32, #tpu.memory_space<vmem>>, vector<2x8xf32>
    %c0_1 = arith.constant 0 : index
    %c0_2 = arith.constant 0 : index
    %1 = vector.load %arg2[%c0_1, %c0_2] : memref<272x128xf32, #tpu.memory_space<vmem>>, vector<8x128xf32>
    %c8 = arith.constant 8 : index
    %c0_3 = arith.constant 0 : index
    %2 = vector.load %arg2[%c8, %c0_3] : memref<272x128xf32, #tpu.memory_space<vmem>>, vector<128x128xf32>
    %c136 = arith.constant 136 : index
    %c0_4 = arith.constant 0 : index
    %3 = vector.load %arg2[%c136, %c0_4] : memref<272x128xf32, #tpu.memory_space<vmem>>, vector<128x128xf32>
    %c264 = arith.constant 264 : index
    %c0_5 = arith.constant 0 : index
    %4 = vector.load %arg2[%c264, %c0_5] : memref<272x128xf32, #tpu.memory_space<vmem>>, vector<8x128xf32>
    %5 = vector.extract_strided_slice %4 {offsets = [0, 0], sizes = [1, 128], strides = [1, 1]} : vector<8x128xf32> to vector<1x128xf32>
    %6 = vector.extract_strided_slice %4 {offsets = [1, 0], sizes = [1, 128], strides = [1, 1]} : vector<8x128xf32> to vector<1x128xf32>
    %7 = vector.extract_strided_slice %4 {offsets = [2, 0], sizes = [1, 128], strides = [1, 1]} : vector<8x128xf32> to vector<1x128xf32>
    %cst = arith.constant dense<0.000000e+00> : vector<2x128xf32>
    %8 = tpu.matmul %0, %1, %cst {dimension_numbers = #tpu.dot_dimension_numbers<[1], [0], [0], [1], [0, 0, 1, 1], [], []>} : vector<2x8xf32>, vector<8x128xf32>, vector<2x128xf32> -> vector<2x128xf32>
    %9 = vector.broadcast %5 : vector<1x128xf32> to vector<2x128xf32>
    %10 = arith.addf %8, %9 : vector<2x128xf32>
    %cst_6 = arith.constant 0.000000e+00 : f32
    %11 = vector.broadcast %cst_6 : f32 to vector<2x128xf32>
    %12 = arith.maximumf %10, %11 : vector<2x128xf32>
    %cst_7 = arith.constant dense<0.000000e+00> : vector<2x128xf32>
    %13 = tpu.matmul %12, %2, %cst_7 {dimension_numbers = #tpu.dot_dimension_numbers<[1], [0], [0], [1], [0, 0, 1, 1], [], []>} : vector<2x128xf32>, vector<128x128xf32>, vector<2x128xf32> -> vector<2x128xf32>
    %14 = vector.broadcast %6 : vector<1x128xf32> to vector<2x128xf32>
    %15 = arith.addf %13, %14 : vector<2x128xf32>
    %cst_8 = arith.constant 0.000000e+00 : f32
    %16 = vector.broadcast %cst_8 : f32 to vector<2x128xf32>
    %17 = arith.maximumf %15, %16 : vector<2x128xf32>
    %cst_9 = arith.constant dense<0.000000e+00> : vector<2x128xf32>
    %18 = tpu.matmul %17, %3, %cst_9 {dimension_numbers = #tpu.dot_dimension_numbers<[1], [0], [0], [1], [0, 0, 1, 1], [], []>} : vector<2x128xf32>, vector<128x128xf32>, vector<2x128xf32> -> vector<2x128xf32>
    %19 = vector.broadcast %7 : vector<1x128xf32> to vector<2x128xf32>
    %20 = arith.addf %18, %19 : vector<2x128xf32>
    %c0_10 = arith.constant 0 : index
    %c0_11 = arith.constant 0 : index
    %21 = vector.load %arg3[%c0_10, %c0_11] : memref<2x128xf32, #tpu.memory_space<vmem>>, vector<2x128xf32>
    tpu.vector_store %arg3[%c0_10, %c0_11], %20 {strides = array<i32>} : memref<2x128xf32, #tpu.memory_space<vmem>>, vector<2x128xf32>,
    return
  }
  func.func @transform_0(%arg0: i32) -> (i32, i32) {
    %c0_i32 = arith.constant 0 : i32
    %c0_i32_0 = arith.constant 0 : i32
    return %arg0, %c0_i32 : i32, i32
  }
  func.func @transform_1(%arg0: i32) -> (i32, i32) {
    %c0_i32 = arith.constant 0 : i32
    %c0_i32_0 = arith.constant 0 : i32
    %c0_i32_1 = arith.constant 0 : i32
    return %c0_i32, %c0_i32_0 : i32, i32
  }
  func.func @transform_2(%arg0: i32) -> (i32, i32) {
    %c0_i32 = arith.constant 0 : i32
    %c0_i32_0 = arith.constant 0 : i32
    return %arg0, %c0_i32 : i32, i32
  }
}

</mosaic_0001>

<llo_original>
// kernel: tpu_custom_call.1
$region0: #{tpu_custom_call.1}
  #allocation0 [shape = 'u32[]', space=smem, size = 0x4, offset = 0x4, fixed_abs, tag = 'smem constant byte address 0x4 - core index']
  #allocation1 [shape = 'u32[72,128]{1,0:T(1,128)}', space=vmem, size = 0x9000, scoped, tag = 'internal scratch']
  %s0 = inlined_call_operand.hbm [shape: f32[2,8], index: 0, kind: input, shape index: {}]
  %s1 = inlined_call_operand.hbm [shape: f32[272,128], index: 1, kind: input, shape index: {}]
  %s2 = inlined_call_operand.hbm [shape: f32[2,128], index: 2, kind: output, shape index: {}]
  %s3 = sld [smem:[#allocation0]]
  $region26: #{tpu_custom_call.1} parent=0
    _
  %s5 = ssub.s32 1, %s3
  %s6 = scalar_select 0, %s5, %s3
  $region1: #{tpu_custom_call.1} parent=0
    #allocation2 [shape = 'u8[1024]{0}', space=vmem, size = 0x400, scoped, tag = 'input window, operand 0, single buffered']
    #allocation3 [shape = 's32[1]{0}', space=sflag, size = 0x4, scoped, tag = 'scoped memory for tpu_custom_call.1']
    #allocation4 [shape = 's32[1]{0}', space=sflag, size = 0x4, scoped, tag = 'scoped memory for tpu_custom_call.1']
    #allocation5 [shape = 'u8[139264]{0}', space=vmem, size = 0x22000, scoped, tag = 'input window, operand 1, single buffered']
    #allocation6 [shape = 's32[1]{0}', space=sflag, size = 0x4, scoped, tag = 'scoped memory for tpu_custom_call.1']
    #allocation7 [shape = 'u8[1024]{0}', space=vmem, size = 0x400, scoped, tag = 'output window, operand 0, single buffered']
    %7 = vsyncpa [#allocation3], 0
    %8 = vsyncpa [#allocation6], 0
    %9 = vsyncpa [#allocation4], 0
    // Predicated region
    $region2: #{tpu_custom_call.1} parent=1 // pred_check
      _
    $region3: #{tpu_custom_call.1} parent=1 // pred_check_branch
      %11 = sbr.rel (0) target = $region5
    $region4: #{tpu_custom_call.1} parent=1 // pred_region
      %13 = vsyncadd [#allocation3], 0
      %s15 = sshll.u32 %s0, 4
      %s16 = int_to_ptr.hbm [resolvable:$true] %s15
      %s17 = sshll.u32 [#allocation2], 4
      %s18 = int_to_ptr.vmem [resolvable:$true] %s17
      %20 = dma.hbm_to_vmem [thread:$0]  %s16, 32, %s18, [#allocation3]
    $region5: #{tpu_custom_call.1} parent=1 // pred_fallthru
      _
    // Predicated region
    $region6: #{tpu_custom_call.1} parent=1 // pred_check
      _
    $region7: #{tpu_custom_call.1} parent=1 // pred_check_branch
      %22 = sbr.rel (0) target = $region9
    $region8: #{tpu_custom_call.1} parent=1 // pred_region
      %24 = vsyncadd [#allocation6], 0
      %s25 = sshll.u32 %s1, 4
      %s26 = int_to_ptr.hbm [resolvable:$true] %s25
      %s27 = sshll.u32 [#allocation5], 4
      %s28 = int_to_ptr.vmem [resolvable:$true] %s27
      %33 = dma.hbm_to_vmem [thread:$0]  %s26, 4352, %s28, [#allocation6], 128, 128, 8
    $region9: #{tpu_custom_call.1} parent=1 // pred_fallthru
      _
    // Predicated region
    $region10: #{tpu_custom_call.1} parent=1 // pred_check
      _
    $region11: #{tpu_custom_call.1} parent=1 // pred_check_branch
      %35 = sbr.rel (0) target = $region13
    $region12: #{tpu_custom_call.1} parent=1 // pred_region
      %37 = dma.done [#allocation3], 32
    $region13: #{tpu_custom_call.1} parent=1 // pred_fallthru
      _
    // Predicated region
    $region14: #{tpu_custom_call.1} parent=1 // pred_check
      _
    $region15: #{tpu_custom_call.1} parent=1 // pred_check_branch
      %39 = sbr.rel (0) target = $region17
    $region16: #{tpu_custom_call.1} parent=1 // pred_region
      %41 = dma.done [#allocation6], 4352
    $region17: #{tpu_custom_call.1} parent=1 // pred_fallthru
      _
    %v42 = vld [vmem:[#allocation2] sm:$0x3]
    %v43 = vld [vmem:[#allocation5] sm:$0xff]
    %v44 = vld [vmem:[#allocation5 + $0x8] sm:$0xff]
    %v45 = vld [vmem:[#allocation5 + $0x10] sm:$0xff]
    %v46 = vld [vmem:[#allocation5 + $0x18] sm:$0xff]
    %v47 = vld [vmem:[#allocation5 + $0x20] sm:$0xff]
    %v48 = vld [vmem:[#allocation5 + $0x28] sm:$0xff]
    %v49 = vld [vmem:[#allocation5 + $0x30] sm:$0xff]
    %v50 = vld [vmem:[#allocation5 + $0x38] sm:$0xff]
    %v51 = vld [vmem:[#allocation5 + $0x40] sm:$0xff]
    %v52 = vld [vmem:[#allocation5 + $0x48] sm:$0xff]
    %v53 = vld [vmem:[#allocation5 + $0x50] sm:$0xff]
    %v54 = vld [vmem:[#allocation5 + $0x58] sm:$0xff]
    %v55 = vld [vmem:[#allocation5 + $0x60] sm:$0xff]
    %v56 = vld [vmem:[#allocation5 + $0x68] sm:$0xff]
    %v57 = vld [vmem:[#allocation5 + $0x70] sm:$0xff]
    %v58 = vld [vmem:[#allocation5 + $0x78] sm:$0xff]
    %v59 = vld [vmem:[#allocation5 + $0x80] sm:$0xff]
    %v60 = vld [vmem:[#allocation5 + $0x88] sm:$0xff]
    %v61 = vld [vmem:[#allocation5 + $0x90] sm:$0xff]
    %v62 = vld [vmem:[#allocation5 + $0x98] sm:$0xff]
    %v63 = vld [vmem:[#allocation5 + $0xa0] sm:$0xff]
    %v64 = vld [vmem:[#allocation5 + $0xa8] sm:$0xff]
    %v65 = vld [vmem:[#allocation5 + $0xb0] sm:$0xff]
    %v66 = vld [vmem:[#allocation5 + $0xb8] sm:$0xff]
    %v67 = vld [vmem:[#allocation5 + $0xc0] sm:$0xff]
    %v68 = vld [vmem:[#allocation5 + $0xc8] sm:$0xff]
    %v69 = vld [vmem:[#allocation5 + $0xd0] sm:$0xff]
    %v70 = vld [vmem:[#allocation5 + $0xd8] sm:$0xff]
    %v71 = vld [vmem:[#allocation5 + $0xe0] sm:$0xff]
    %v72 = vld [vmem:[#allocation5 + $0xe8] sm:$0xff]
    %v73 = vld [vmem:[#allocation5 + $0xf0] sm:$0xff]
    %v74 = vld [vmem:[#allocation5 + $0xf8] sm:$0xff]
    %v75 = vld [vmem:[#allocation5 + $0x100] sm:$0xff]
    %v76 = vld [vmem:[#allocation5 + $0x108] sm:$0xff]
    %v77 = vperm.slane %v76, 0
    %vm78 = vcmask 64512
    %v80 = vsel %vm78, %v42, 0
    %82 = vmatpush.msra.mxu0 0.0
    %83 = vmatpush.msra.mxu0 0.0
    %84 = vmatpush.msra.mxu0 0.0
    %85 = vmatpush.msra.mxu0 0.0
    %86 = vmatpush.msra.mxu0 0.0
    %87 = vmatpush.msra.mxu0 0.0
    %88 = vmatpush.msra.mxu0 0.0
    %89 = vmatpush.msra.mxu0 0.0
    %90 = vmatpush.msra.mxu0 0.0
    %91 = vmatpush.msra.mxu0 0.0
    %92 = vmatpush.msra.mxu0 0.0
    %93 = vmatpush.msra.mxu0 0.0
    %94 = vmatpush.msra.mxu0 0.0
    %95 = vmatpush.msra.mxu0 0.0
    %96 = vmatpush.msra.mxu0 0.0
    %97 = vmatpush.msra.mxu0 %v43
    %98 = vmatmul.f32.gmra.mxu0 %v80
    %v99 = vpop.f32.mrf.mxu0
    %v100 = vadd.f32 %v77, %v99
    %101 = vdwg.mxu0
    %v102 = vmax.f32 %v100, 0.0
    %v103 = vperm.slane %v76, 1
    %104 = vmatpush.msra.mxu0 %v59
    %105 = vmatpush.msra.mxu0 %v58
    %106 = vmatpush.msra.mxu0 %v57
    %107 = vmatpush.msra.mxu0 %v56
    %108 = vmatpush.msra.mxu0 %v55
    %109 = vmatpush.msra.mxu0 %v54
    %110 = vmatpush.msra.mxu0 %v53
    %111 = vmatpush.msra.mxu0 %v52
    %112 = vmatpush.msra.mxu0 %v51
    %113 = vmatpush.msra.mxu0 %v50
    %114 = vmatpush.msra.mxu0 %v49
    %115 = vmatpush.msra.mxu0 %v48
    %116 = vmatpush.msra.mxu0 %v47
    %117 = vmatpush.msra.mxu0 %v46
    %118 = vmatpush.msra.mxu0 %v45
    %119 = vmatpush.msra.mxu0 %v44
    %120 = vmatmul.f32.gmra.mxu0 %v102
    %v121 = vpop.f32.mrf.mxu0
    %v122 = vadd.f32 %v103, %v121
    %123 = vdwg.mxu0
    %v124 = vmax.f32 %v122, 0.0
    %v125 = vperm.slane %v76, 2
    %126 = vmatpush.msra.mxu0 %v75
    %127 = vmatpush.msra.mxu0 %v74
    %128 = vmatpush.msra.mxu0 %v73
    %129 = vmatpush.msra.mxu0 %v72
    %130 = vmatpush.msra.mxu0 %v71
    %131 = vmatpush.msra.mxu0 %v70
    %132 = vmatpush.msra.mxu0 %v69
    %133 = vmatpush.msra.mxu0 %v68
    %134 = vmatpush.msra.mxu0 %v67
    %135 = vmatpush.msra.mxu0 %v66
    %136 = vmatpush.msra.mxu0 %v65
    %137 = vmatpush.msra.mxu0 %v64
    %138 = vmatpush.msra.mxu0 %v63
    %139 = vmatpush.msra.mxu0 %v62
    %140 = vmatpush.msra.mxu0 %v61
    %141 = vmatpush.msra.mxu0 %v60
    %142 = vmatmul.f32.gmra.mxu0 %v124
    %v143 = vpop.f32.mrf.mxu0
    %v144 = vadd.f32 %v125, %v143
    %145 = vdwg.mxu0
    %146 = vst [vmem:[#allocation7] sm:$0x3] %v144
    // Predicated region
    $region18: #{tpu_custom_call.1} parent=1 // pred_check
      _
    $region19: #{tpu_custom_call.1} parent=1 // pred_check_branch
      %148 = sbr.rel (0) target = $region21
    $region20: #{tpu_custom_call.1} parent=1 // pred_region
      %150 = vsyncadd [#allocation4], 0
      %s152 = sshll.u32 [#allocation7], 4
      %s153 = int_to_ptr.vmem [resolvable:$true] %s152
      %s154 = sshll.u32 %s2, 4
      %s155 = int_to_ptr.hbm [resolvable:$true] %s154
      %157 = dma.vmem_to_hbm [thread:$0]  %s153, 32, %s155, [#allocation4]
    $region21: #{tpu_custom_call.1} parent=1 // pred_fallthru
      _
    // Predicated region
    $region22: #{tpu_custom_call.1} parent=1 // pred_check
      _
    $region23: #{tpu_custom_call.1} parent=1 // pred_check_branch
      %159 = sbr.rel (0) target = $region25
    $region24: #{tpu_custom_call.1} parent=1 // pred_region
      %161 = dma.done [#allocation4], 32
    $region25: #{tpu_custom_call.1} parent=1 // pred_fallthru
      _
    %162 = vsyncpa [#allocation3], 1
    %163 = vsyncpa [#allocation6], 1
    %164 = vsyncpa [#allocation4], 1

</llo_original>
